<compile_context>
chip_gen: v5e
topology: v5e:2x2
jax: 0.10.0
libtpu: 0.0.40
codegen_flags: <defaults>
</compile_context>

<pallas_src>
import jax
import jax.numpy as jnp
from jax import lax
from jax.experimental import pallas as pl
from jax.experimental.pallas import tpu as pltpu


def _round_up(x, m):
    return (x + m - 1) // m * m


def planar_flow_kernel(sc_ref, z_ref, w_ref, s_ref, zt_ref, ldj_ref):
    b = sc_ref[0]        # bias (f32 scalar, SMEM)
    sw = sc_ref[1]       # sum(scale * weight), precomputed in the wrapper

    z = z_ref[...].astype(jnp.float32)      # (TB, D)
    w = w_ref[...].astype(jnp.float32)      # (1, D)  resident across grid
    s = s_ref[...].astype(jnp.float32)      # (1, D)  resident across grid

    # ---- z_transformed path: width-1 contraction on VPU (mul) + XLU (reduce),
    # tanh on EUP.  (Kept off the MXU per review.)
    linear = jnp.sum(z * w, axis=-1, keepdims=True) + b      # (TB, 1)
    act = jnp.tanh(linear)                                    # (TB, 1)
    zt_ref[...] = (z + s * act).astype(zt_ref.dtype)          # (TB, D)

    # ---- log-det path, lane-dense: redo the row dot as (1,D) x (TB,D)^T on
    # the otherwise-idle MXU so the (1, TB) result and its tanh/log stay dense
    # along lanes and the ldj write is an unmasked full-lane store.
    linear_row = lax.dot_general(
        w, z, (((1,), (1,)), ((), ())),
        preferred_element_type=jnp.float32) + b               # (1, TB)
    act_row = jnp.tanh(linear_row)
    det_row = jnp.abs(1.0 + (1.0 - act_row * act_row) * sw)   # (1, TB)
    ldj_ref[...] = jnp.log(det_row).astype(ldj_ref.dtype)


def planar_flow(z, weight, scale, bias, *, tb=1024):
    B, D = z.shape

    # Grid-invariant scalars, computed once on the host side and placed in SMEM.
    sw = jnp.sum(scale.astype(jnp.float32) * weight.astype(jnp.float32))
    scalars = jnp.stack([jnp.reshape(bias, ()).astype(jnp.float32), sw])  # (2,)

    # Batch tile: multiple of 8 sublanes; multiple of 128 when tiling so the
    # lane-dense (1, TB) ldj blocks satisfy the lane constraint.
    if B <= tb:
        TB = _round_up(B, 8)          # single tile
    else:
        TB = tb                       # tb is a multiple of 8 and 128
    B_pad = _round_up(B, TB)
    z_in = z if B_pad == B else jnp.pad(z, ((0, B_pad - B), (0, 0)))

    grid = (B_pad // TB,)
    zt, ldj = pl.pallas_call(
        planar_flow_kernel,
        out_shape=(jax.ShapeDtypeStruct((B_pad, D), z.dtype),
                   jax.ShapeDtypeStruct((1, B_pad), jnp.float32)),
        grid_spec=pltpu.PrefetchScalarGridSpec(
            num_scalar_prefetch=0,
            grid=grid,
            in_specs=[
                pl.BlockSpec(memory_space=pltpu.MemorySpace.SMEM),  # [bias, sw]
                pl.BlockSpec((TB, D), lambda i: (i, 0)),            # z tile
                pl.BlockSpec((1, D), lambda i: (0, 0)),             # weight
                pl.BlockSpec((1, D), lambda i: (0, 0)),             # scale
            ],
            out_specs=[
                pl.BlockSpec((TB, D), lambda i: (i, 0)),            # z_transformed
                pl.BlockSpec((1, TB), lambda i: (0, i)),            # ldj, lane-dense
            ],
        ),
        compiler_params=pltpu.CompilerParams(
            dimension_semantics=("parallel",)),
    )(scalars, z_in, weight, scale)

    if B_pad != B:
        zt = zt[:B]
        ldj = ldj[:, :B]
    return zt, ldj


def planar_flow_ref(z, weight, scale, bias):
    linear = z @ weight.T + bias            # (B, 1)
    act = jnp.tanh(linear)
    act_d = 1.0 - act ** 2
    psi = act_d * weight                    # (B, D)
    z_out = z + scale * act
    det = jnp.abs(1.0 + scale @ psi.T)      # (1, B)
    return z_out, jnp.log(det)


if __name__ == "__main__":
    latent_dim = 32
    batch = 8

    key = jax.random.PRNGKey(0)
    k_w, k_s, k_b, k_z = jax.random.split(key, 4)
    weight = jax.random.normal(k_w, (1, latent_dim), dtype=jnp.float32)
    scale = jax.random.normal(k_s, (1, latent_dim), dtype=jnp.float32)
    bias = jax.random.normal(k_b, (1,), dtype=jnp.float32)
    z = jax.random.normal(k_z, (batch, latent_dim), dtype=jnp.float32)

    zt, ldj = planar_flow(z, weight, scale, bias)
    jax.block_until_ready((zt, ldj))

    zt_ref, ldj_ref = planar_flow_ref(z, weight, scale, bias)
    assert zt.shape == (batch, latent_dim) and ldj.shape == (1, batch)
    assert jnp.allclose(zt, zt_ref, atol=1e-5, rtol=1e-5)
    assert jnp.allclose(ldj, ldj_ref, atol=1e-5, rtol=1e-5)

    print("KERNEL_OK")
</pallas_src>

<mosaic_0001>
module attributes {stable_mosaic.version = 11 : i64} {
  func.func @planar_flow_kernel(%arg0: i32, %arg1: memref<2xf32, #tpu.memory_space<smem>>, %arg2: memref<8x32xf32, #tpu.memory_space<vmem>>, %arg3: memref<1x32xf32, #tpu.memory_space<vmem>>, %arg4: memref<1x32xf32, #tpu.memory_space<vmem>>, %arg5: memref<8x32xf32, #tpu.memory_space<vmem>>, %arg6: memref<1x8xf32, #tpu.memory_space<vmem>>) attributes {dimension_semantics = [#tpu.dimension_semantics<parallel>], iteration_bounds = array<i64: 1>, scalar_prefetch = 0 : i64, scratch_operands = 0 : i64, tpu.core_type = #tpu.core_type<tc>, window_params = [{transform_indices = @transform_0, window_bounds = array<i64: 2>}, {transform_indices = @transform_1, window_bounds = array<i64: 8, 32>}, {pipeline_mode = #tpu.pipeline_mode<synchronous>, transform_indices = @transform_2, window_bounds = array<i64: 1, 32>}, {pipeline_mode = #tpu.pipeline_mode<synchronous>, transform_indices = @transform_3, window_bounds = array<i64: 1, 32>}, {transform_indices = @transform_4, window_bounds = array<i64: 8, 32>}, {transform_indices = @transform_5, window_bounds = array<i64: 1, 8>}]} {
    %c0 = arith.constant 0 : index
    %0 = memref.load %arg1[%c0] : memref<2xf32, #tpu.memory_space<smem>>
    %c1 = arith.constant 1 : index
    %1 = memref.load %arg1[%c1] : memref<2xf32, #tpu.memory_space<smem>>
    %c0_0 = arith.constant 0 : index
    %c0_1 = arith.constant 0 : index
    %2 = vector.load %arg2[%c0_0, %c0_1] : memref<8x32xf32, #tpu.memory_space<vmem>>, vector<8x32xf32>
    %c0_2 = arith.constant 0 : index
    %c0_3 = arith.constant 0 : index
    %3 = vector.load %arg3[%c0_2, %c0_3] : memref<1x32xf32, #tpu.memory_space<vmem>>, vector<1x32xf32>
    %c0_4 = arith.constant 0 : index
    %c0_5 = arith.constant 0 : index
    %4 = vector.load %arg4[%c0_4, %c0_5] : memref<1x32xf32, #tpu.memory_space<vmem>>, vector<1x32xf32>
    %5 = vector.broadcast %3 : vector<1x32xf32> to vector<8x32xf32>
    %6 = arith.mulf %2, %5 : vector<8x32xf32>
    %cst = arith.constant dense<0.000000e+00> : vector<8xf32>
    %7 = vector.multi_reduction <add>, %6, %cst [1] : vector<8x32xf32> to vector<8xf32>
    %8 = vector.shape_cast %7 : vector<8xf32> to vector<8x1xf32>
    %9 = vector.broadcast %0 : f32 to vector<8x1xf32>
    %10 = arith.addf %8, %9 : vector<8x1xf32>
    %11 = math.tanh %10 : vector<8x1xf32>
    %12 = vector.broadcast %4 : vector<1x32xf32> to vector<8x32xf32>
    %13 = vector.broadcast %11 : vector<8x1xf32> to vector<8x32xf32>
    %14 = arith.mulf %12, %13 : vector<8x32xf32>
    %15 = arith.addf %2, %14 : vector<8x32xf32>
    %c0_6 = arith.constant 0 : index
    %c0_7 = arith.constant 0 : index
    %16 = vector.load %arg5[%c0_6, %c0_7] : memref<8x32xf32, #tpu.memory_space<vmem>>, vector<8x32xf32>
    tpu.vector_store %arg5[%c0_6, %c0_7], %15 {strides = array<i32>} : memref<8x32xf32, #tpu.memory_space<vmem>>, vector<8x32xf32>,
    %cst_8 = arith.constant dense<0.000000e+00> : vector<1x8xf32>
    %17 = tpu.matmul %3, %2, %cst_8 {dimension_numbers = #tpu.dot_dimension_numbers<[1], [1], [0], [0], [0, 0, 1, 0], [], []>} : vector<1x32xf32>, vector<8x32xf32>, vector<1x8xf32> -> vector<1x8xf32>
    %18 = vector.broadcast %0 : f32 to vector<1x8xf32>
    %19 = arith.addf %17, %18 : vector<1x8xf32>
    %20 = math.tanh %19 : vector<1x8xf32>
    %21 = arith.mulf %20, %20 : vector<1x8xf32>
    %cst_9 = arith.constant 1.000000e+00 : f32
    %22 = vector.broadcast %cst_9 : f32 to vector<1x8xf32>
    %23 = arith.subf %22, %21 : vector<1x8xf32>
    %24 = vector.broadcast %1 : f32 to vector<1x8xf32>
    %25 = arith.mulf %23, %24 : vector<1x8xf32>
    %cst_10 = arith.constant 1.000000e+00 : f32
    %26 = vector.broadcast %cst_10 : f32 to vector<1x8xf32>
    %27 = arith.addf %26, %25 : vector<1x8xf32>
    %28 = math.absf %27 : vector<1x8xf32>
    %29 = math.log %28 : vector<1x8xf32>
    %c0_11 = arith.constant 0 : index
    %c0_12 = arith.constant 0 : index
    %30 = vector.load %arg6[%c0_11, %c0_12] : memref<1x8xf32, #tpu.memory_space<vmem>>, vector<1x8xf32>
    tpu.vector_store %arg6[%c0_11, %c0_12], %29 {strides = array<i32>} : memref<1x8xf32, #tpu.memory_space<vmem>>, vector<1x8xf32>,
    return
  }
  func.func @transform_0(%arg0: i32) -> i32 {
    %c0_i32 = arith.constant 0 : i32
    %c0_i32_0 = arith.constant 0 : i32
    return %c0_i32 : i32
  }
  func.func @transform_1(%arg0: i32) -> (i32, i32) {
    %c0_i32 = arith.constant 0 : i32
    %c0_i32_0 = arith.constant 0 : i32
    return %arg0, %c0_i32 : i32, i32
  }
  func.func @transform_2(%arg0: i32) -> (i32, i32) {
    %c0_i32 = arith.constant 0 : i32
    %c0_i32_0 = arith.constant 0 : i32
    %c0_i32_1 = arith.constant 0 : i32
    return %c0_i32, %c0_i32_0 : i32, i32
  }
  func.func @transform_3(%arg0: i32) -> (i32, i32) {
    %c0_i32 = arith.constant 0 : i32
    %c0_i32_0 = arith.constant 0 : i32
    %c0_i32_1 = arith.constant 0 : i32
    return %c0_i32, %c0_i32_0 : i32, i32
  }
  func.func @transform_4(%arg0: i32) -> (i32, i32) {
    %c0_i32 = arith.constant 0 : i32
    %c0_i32_0 = arith.constant 0 : i32
    return %arg0, %c0_i32 : i32, i32
  }
  func.func @transform_5(%arg0: i32) -> (i32, i32) {
    %c0_i32 = arith.constant 0 : i32
    %c0_i32_0 = arith.constant 0 : i32
    return %c0_i32, %arg0 : i32, i32
  }
}

</mosaic_0001>

<llo_original>
// kernel: tpu_custom_call.1
$region0: #{tpu_custom_call.1}
  #allocation0 [shape = 'u32[]', space=smem, size = 0x4, offset = 0x4, fixed_abs, tag = 'smem constant byte address 0x4 - core index']
  #allocation1 [shape = 'u32[72,128]{1,0:T(1,128)}', space=vmem, size = 0x9000, scoped, tag = 'internal scratch']
  %s0 = inlined_call_operand.hbm [shape: f32[2], index: 0, kind: input, shape index: {}]
  %s1 = inlined_call_operand.hbm [shape: f32[8,32], index: 1, kind: input, shape index: {}]
  %s2 = inlined_call_operand.vmem [shape: f32[1,32], index: 2, kind: input, shape index: {}]
  %s3 = inlined_call_operand.vmem [shape: f32[1,32], index: 3, kind: input, shape index: {}]
  %s4 = inlined_call_operand.hbm [shape: f32[8,32], index: 4, kind: output, shape index: {0}]
  %s5 = inlined_call_operand.hbm [shape: f32[1,8], index: 5, kind: output, shape index: {1}]
  %6 = xla_tuple %s4, %s5
  %s7 = sld [smem:[#allocation0]]
  $region42: #{tpu_custom_call.1} parent=0
    _
  %s9 = ssub.s32 1, %s7
  %s10 = scalar_select 0, %s9, %s7
  $region1: #{tpu_custom_call.1} parent=0
    #allocation2 [shape = 'u8[512]{0}', space=smem, size = 0x200, scoped, tag = 'input window, operand 0, single buffered']
    #allocation3 [shape = 's32[1]{0}', space=sflag, size = 0x4, scoped, tag = 'scoped memory for tpu_custom_call.1']
    #allocation4 [shape = 's32[1]{0}', space=sflag, size = 0x4, scoped, tag = 'scoped memory for tpu_custom_call.1']
    #allocation5 [shape = 's32[1]{0}', space=sflag, size = 0x4, scoped, tag = 'scoped memory for tpu_custom_call.1']
    #allocation6 [shape = 'u8[4096]{0}', space=vmem, size = 0x1000, scoped, tag = 'input window, operand 1, single buffered']
    #allocation7 [shape = 'u8[4096]{0}', space=vmem, size = 0x1000, scoped, tag = 'output window, operand 0, single buffered']
    #allocation8 [shape = 'u8[512]{0}', space=vmem, size = 0x400, scoped, tag = 'output window, operand 1, single buffered']
    #allocation9 [shape = 's32[1]{0}', space=sflag, size = 0x4, scoped, tag = 'scoped memory for tpu_custom_call.1']
    %11 = vsyncpa [#allocation5], 0
    %12 = vsyncpa [#allocation3], 0
    %13 = vsyncpa [#allocation4], 0
    %14 = vsyncpa [#allocation9], 0
    // Predicated region
    $region2: #{tpu_custom_call.1} parent=1 // pred_check
      _
    $region3: #{tpu_custom_call.1} parent=1 // pred_check_branch
      %16 = sbr.rel (0) target = $region5
    $region4: #{tpu_custom_call.1} parent=1 // pred_region
      %18 = vsyncadd [#allocation5], 0
      %s20 = sshll.u32 %s0, 4
      %s21 = int_to_ptr.hbm [resolvable:$true] %s20
      %23 = dma.hbm_to_smem %s21, 16, [#allocation2], [#allocation5]
    $region5: #{tpu_custom_call.1} parent=1 // pred_fallthru
      _
    // Predicated region
    $region6: #{tpu_custom_call.1} parent=1 // pred_check
      _
    $region7: #{tpu_custom_call.1} parent=1 // pred_check_branch
      %25 = sbr.rel (0) target = $region9
    $region8: #{tpu_custom_call.1} parent=1 // pred_region
      %27 = vsyncadd [#allocation3], 0
      %s29 = sshll.u32 %s1, 4
      %s30 = int_to_ptr.hbm [resolvable:$true] %s29
      %s31 = sshll.u32 [#allocation6], 4
      %s32 = int_to_ptr.vmem [resolvable:$true] %s31
      %34 = dma.hbm_to_vmem [thread:$0]  %s30, 128, %s32, [#allocation3]
    $region9: #{tpu_custom_call.1} parent=1 // pred_fallthru
      _
    // Predicated region
    $region10: #{tpu_custom_call.1} parent=1 // pred_check
      _
    $region11: #{tpu_custom_call.1} parent=1 // pred_check_branch
      %36 = sbr.rel (0) target = $region13
    $region12: #{tpu_custom_call.1} parent=1 // pred_region
      _
    $region13: #{tpu_custom_call.1} parent=1 // pred_fallthru
      _
    // Predicated region
    $region14: #{tpu_custom_call.1} parent=1 // pred_check
      _
    $region15: #{tpu_custom_call.1} parent=1 // pred_check_branch
      %38 = sbr.rel (0) target = $region17
    $region16: #{tpu_custom_call.1} parent=1 // pred_region
      _
    $region17: #{tpu_custom_call.1} parent=1 // pred_fallthru
      _
    // Predicated region
    $region18: #{tpu_custom_call.1} parent=1 // pred_check
      _
    $region19: #{tpu_custom_call.1} parent=1 // pred_check_branch
      %40 = sbr.rel (0) target = $region21
    $region20: #{tpu_custom_call.1} parent=1 // pred_region
      %42 = dma.done [#allocation5], 16
    $region21: #{tpu_custom_call.1} parent=1 // pred_fallthru
      _
    // Predicated region
    $region22: #{tpu_custom_call.1} parent=1 // pred_check
      _
    $region23: #{tpu_custom_call.1} parent=1 // pred_check_branch
      %44 = sbr.rel (0) target = $region25
    $region24: #{tpu_custom_call.1} parent=1 // pred_region
      %46 = dma.done [#allocation3], 128
    $region25: #{tpu_custom_call.1} parent=1 // pred_fallthru
      _
    %47 = sfence
    %s48 = sld [smem:[#allocation2]]
    %s49 = sld [smem:[#allocation2 + $0x1]]
    %v50 = vld [vmem:[#allocation6] sm:$0xff]
    %v51 = vld [vmem:[%s2] sm:$0x1]
    %v52 = vld [vmem:[%s3] sm:$0x1]
    %v54 = vperm.slane %v51, 0
    %v56 = vmul.f32 %v50, %v54
    %vm57 = vcmask 261120
    %v58 = vsel %vm57, %v56, 0.0
    %59 = vadd.xlane.f32.xlu0 %v58
    %v60 = vpop.xlane.xlu0 %59
    %v61 = vstv %s48
    %v62 = vadd.f32 %v60, %v61
    %v63 = vtanh.pop %v62
    %v65 = vperm.slane %v52, 0
    %v67 = vmul.f32 %v65, %v63
    %v68 = vadd.f32 %v50, %v67
    %69 = vst.msk [vmem:[#allocation7] sm:$0xff] %vm57, %v68
    %v70 = vsel %vm57, %v51, 0
    %v73 = vsel %vm57, %v50, 0
    %75 = vmatpush.xpose.msra.mxu0 0.0
    %76 = vmatpush.xpose.msra.mxu0 0.0
    %77 = vmatpush.xpose.msra.mxu0 0.0
    %78 = vmatpush.xpose.msra.mxu0 0.0
    %79 = vmatpush.xpose.msra.mxu0 0.0
    %80 = vmatpush.xpose.msra.mxu0 0.0
    %81 = vmatpush.xpose.msra.mxu0 0.0
    %82 = vmatpush.xpose.msra.mxu0 0.0
    %83 = vmatpush.xpose.msra.mxu0 0.0
    %84 = vmatpush.xpose.msra.mxu0 0.0
    %85 = vmatpush.xpose.msra.mxu0 0.0
    %86 = vmatpush.xpose.msra.mxu0 0.0
    %87 = vmatpush.xpose.msra.mxu0 0.0
    %88 = vmatpush.xpose.msra.mxu0 0.0
    %89 = vmatpush.xpose.msra.mxu0 0.0
    %90 = vmatpush.xpose.msra.mxu0 %v73
    %91 = vmatmul.f32.gmra.mxu0 %v70
    %v92 = vpop.f32.mrf.mxu0
    %v93 = vadd.f32 %v61, %v92
    %94 = vdwg.mxu0
    %v95 = vtanh.pop %v93
    %v96 = vmul.f32 %v95, %v95
    %v97 = vsub.f32 1.0, %v96
    %v98 = vstv %s49
    %v99 = vmul.f32 %v97, %v98
    %v100 = vadd.f32 %v99, 1.0
    %v101 = vand.u32 2147483647, %v100
    %v102 = vlog2.pop %v101
    %v103 = vmul.f32 %v102, 0.6931472
    %vm104 = vcmask 57344
    %105 = vst.msk [vmem:[#allocation8] sm:$0x1] %vm104, %v103
    // Predicated region
    $region26: #{tpu_custom_call.1} parent=1 // pred_check
      _
    $region27: #{tpu_custom_call.1} parent=1 // pred_check_branch
      %107 = sbr.rel (0) target = $region29
    $region28: #{tpu_custom_call.1} parent=1 // pred_region
      %109 = vsyncadd [#allocation4], 0
      %s111 = sshll.u32 [#allocation7], 4
      %s112 = int_to_ptr.vmem [resolvable:$true] %s111
      %s113 = sshll.u32 %s4, 4
      %s114 = int_to_ptr.hbm [resolvable:$true] %s113
      %116 = dma.vmem_to_hbm [thread:$0]  %s112, 128, %s114, [#allocation4]
    $region29: #{tpu_custom_call.1} parent=1 // pred_fallthru
      _
    // Predicated region
    $region30: #{tpu_custom_call.1} parent=1 // pred_check
      _
    $region31: #{tpu_custom_call.1} parent=1 // pred_check_branch
      %118 = sbr.rel (0) target = $region33
    $region32: #{tpu_custom_call.1} parent=1 // pred_region
      %120 = vsyncadd [#allocation9], 0
      %s122 = sshll.u32 [#allocation8], 4
      %s123 = int_to_ptr.vmem [resolvable:$true] %s122
      %s124 = sshll.u32 %s5, 4
      %s125 = int_to_ptr.hbm [resolvable:$true] %s124
      %127 = dma.vmem_to_hbm [thread:$0]  %s123, 16, %s125, [#allocation9]
    $region33: #{tpu_custom_call.1} parent=1 // pred_fallthru
      _
    // Predicated region
    $region34: #{tpu_custom_call.1} parent=1 // pred_check
      _
    $region35: #{tpu_custom_call.1} parent=1 // pred_check_branch
      %129 = sbr.rel (0) target = $region37
    $region36: #{tpu_custom_call.1} parent=1 // pred_region
      %131 = dma.done [#allocation4], 128
    $region37: #{tpu_custom_call.1} parent=1 // pred_fallthru
      _
    // Predicated region
    $region38: #{tpu_custom_call.1} parent=1 // pred_check
      _
    $region39: #{tpu_custom_call.1} parent=1 // pred_check_branch
      %133 = sbr.rel (0) target = $region41
    $region40: #{tpu_custom_call.1} parent=1 // pred_region
      %135 = dma.done [#allocation9], 16
    $region41: #{tpu_custom_call.1} parent=1 // pred_fallthru
      _
    %136 = vsyncpa [#allocation3], 1
    %137 = vsyncpa [#allocation4], 1
    %138 = vsyncpa [#allocation9], 1
    %139 = vsyncpa [#allocation5], 1

</llo_original>
